<compile_context>
chip_gen: v6e
topology: v6e:2x2x1
jax: 0.10.0
libtpu: 0.0.40
codegen_flags: <defaults>
</compile_context>

<pallas_src>
import functools
import math

import jax
import jax.numpy as jnp
from jax import lax
from jax.experimental import pallas as pl
from jax.experimental.pallas import tpu as pltpu


def _round_up(x, m):
    return (x + m - 1) // m * m


# ----------------------------------------------------------------------------
# Kernel: one (dst_tile, src_tile) grid step of the fused TransformerConv.
# ----------------------------------------------------------------------------
def _gcn_transformer_kernel(x_dst_ref, x_src_ref, w_dst_ref, w_src_ref, mask_ref,
                            out_ref, qk_ref,
                            d_scr, m_scr, l_scr, acc_scr,
                            *, c, h, hc, scale, out_w, qk_w):
    # x_dst_ref: [TD, F_pad] bf16   node features (dst tile, ones-column folded bias)
    # x_src_ref: [TS, F_pad] bf16   node features (src tile)
    # w_dst_ref: [F_pad, Wd] bf16   fused [Wq | Wskip | Wk] (+ bias row, lane pad)
    # w_src_ref: [F_pad, Ws] bf16   fused [Wk | Wv/h]       (+ bias row, lane pad)
    # mask_ref:  [TD, TS]   int8    mask[dst, src] = 1 iff edge src -> dst
    # out_ref:   [TD, out_w] f32    leaky_relu(out) | per-head lse | zeros
    # qk_ref:    [TD, qk_w]  f32    q | k projections of the dst tile
    j = pl.program_id(1)
    n_src_steps = pl.num_programs(1)

    # --- per-dst-tile init: project q|skip|k once, reset online-softmax state ---
    @pl.when(j == 0)
    def _init():
        d_scr[...] = jnp.dot(x_dst_ref[...], w_dst_ref[...],
                             preferred_element_type=jnp.float32)
        m_scr[...] = jnp.full(m_scr.shape, -jnp.inf, jnp.float32)
        l_scr[...] = jnp.zeros(l_scr.shape, jnp.float32)
        acc_scr[...] = jnp.zeros(acc_scr.shape, jnp.float32)

    # --- src-tile projection: [ k(hc) | v(hc)/h ] ---
    proj_s = jnp.dot(x_src_ref[...], w_src_ref[...],
                     preferred_element_type=jnp.float32)

    maskf = mask_ref[...].astype(jnp.float32)            # [TD, TS], 1.0 on edges
    neg_bias = (maskf - 1.0) * 1e30                      # 0 on edges, -1e30 off

    for hd in range(h):                                  # h == 2 -> fully unrolled
        q = d_scr[:, hd * c:(hd + 1) * c].astype(jnp.bfloat16)
        k = proj_s[:, hd * c:(hd + 1) * c].astype(jnp.bfloat16)
        v = proj_s[:, hc + hd * c:hc + (hd + 1) * c].astype(jnp.bfloat16)

        s = lax.dot_general(q, k, (((1,), (1,)), ((), ())),
                            preferred_element_type=jnp.float32) * scale
        s = s + neg_bias                                  # [TD, TS]

        m_prev = m_scr[hd]                                # [TD, 1]
        m_new = jnp.maximum(m_prev, jnp.max(s, axis=-1, keepdims=True))
        p = jnp.exp(s - m_new) * maskf                    # guards all-masked tiles
        corr = jnp.exp(m_prev - m_new)
        l_scr[hd] = corr * l_scr[hd] + jnp.sum(p, axis=-1, keepdims=True)
        acc_scr[hd] = corr * acc_scr[hd] + jnp.dot(
            p.astype(jnp.bfloat16), v, preferred_element_type=jnp.float32)
        m_scr[hd] = m_new

    # --- finalize on the last src tile: normalize, add skip, leaky_relu, lse ---
    @pl.when(j == n_src_steps - 1)
    def _finalize():
        td = acc_scr.shape[1]
        y = d_scr[:, hc:hc + c]                           # skip projection
        lses = []
        for hd in range(h):
            l = l_scr[hd]
            l_safe = jnp.where(l > 0.0, l, 1.0)           # isolated-node guard
            y = y + acc_scr[hd] * pl.reciprocal(l_safe, approx=True)
            lses.append(m_scr[hd] + jnp.log(l_safe))      # per-head logsumexp
        y = jnp.where(y >= 0.0, y, 0.01 * y)              # leaky_relu(0.01)

        parts = [y] + lses
        pad = out_w - c - h
        if pad > 0:
            parts.append(jnp.zeros((td, pad), jnp.float32))
        out_ref[...] = jnp.concatenate(parts, axis=-1)    # single lane-dense store

        qk = jnp.concatenate([d_scr[:, :hc], d_scr[:, hc + c:hc + c + hc]], axis=-1)
        qpad = qk_w - 2 * hc
        if qpad > 0:
            qk = jnp.concatenate([qk, jnp.zeros((td, qpad), jnp.float32)], axis=-1)
        qk_ref[...] = qk                                   # lane-dense q|k export


# ----------------------------------------------------------------------------
# Wrapper
# ----------------------------------------------------------------------------
def _build_weights(params, input_dim, c, h, f_pad, wd_pad, ws_pad):
    # dst-side fused weight [Wq | Wskip | Wk]; biases folded via x_aug ones-column.
    w_d = jnp.concatenate([params["wq"], params["wskip"], params["wk"]], axis=1)
    b_d = jnp.concatenate([params["bq"], params["bskip"], params["bk"]])
    w_d = jnp.concatenate([w_d, b_d[None, :]], axis=0)
    w_d = jnp.pad(w_d, ((0, f_pad - w_d.shape[0]), (0, wd_pad - w_d.shape[1])))

    # src-side fused weight [Wk | Wv/h]; 1/h head-mean folded into V.
    w_s = jnp.concatenate([params["wk"], params["wv"] / h], axis=1)
    b_s = jnp.concatenate([params["bk"], params["bv"] / h])
    w_s = jnp.concatenate([w_s, b_s[None, :]], axis=0)
    w_s = jnp.pad(w_s, ((0, f_pad - w_s.shape[0]), (0, ws_pad - w_s.shape[1])))
    return w_d.astype(jnp.bfloat16), w_s.astype(jnp.bfloat16)


def gcn_transformer_forward(x, edge_index, params, num_nodes, conv_feat_dim, heads):
    n = num_nodes
    f = x.shape[1]
    c, h = conv_feat_dim, heads
    hc = h * c
    scale = 1.0 / math.sqrt(c)

    # Tile sizes: single tile for small graphs, 128x128 dst/src tiles otherwise.
    if n <= 128:
        n_pad = _round_up(n, 8)
        td = ts = n_pad
    else:
        n_pad = _round_up(n, 128)
        td = ts = 128

    f_pad = _round_up(f + 1, 16)            # ones-column bias fold + aligned K dim
    wd_pad = _round_up(2 * hc + c, 128)     # [q | skip | k] lanes
    ws_pad = _round_up(2 * hc, 128)         # [k | v] lanes
    out_w = _round_up(c + h, 128)           # features + per-head lse, lane-dense
    qk_w = _round_up(2 * hc, 128)

    w_dst, w_src = _build_weights(params, f, c, h, f_pad, wd_pad, ws_pad)

    x_aug = jnp.concatenate([x, jnp.ones((n, 1), x.dtype)], axis=1)
    x_aug = jnp.pad(x_aug, ((0, n_pad - n), (0, f_pad - (f + 1)))).astype(jnp.bfloat16)

    # Dense int8 adjacency mask: mask[dst, src] = 1 iff edge src -> dst exists.
    src_idx, dst_idx = edge_index[0], edge_index[1]
    mask = jnp.zeros((n_pad, n_pad), jnp.int8).at[dst_idx, src_idx].set(1)

    grid = (n_pad // td, n_pad // ts)

    kernel = functools.partial(
        _gcn_transformer_kernel, c=c, h=h, hc=hc, scale=scale,
        out_w=out_w, qk_w=qk_w)

    # Explicit VMEM budget sized from the actual (double-buffered) blocks + scratch.
    vmem_bytes = (
        2 * (td * f_pad + ts * f_pad + f_pad * wd_pad + f_pad * ws_pad) * 2  # bf16 in
        + 2 * td * ts                                                        # int8 mask
        + 2 * (td * out_w + td * qk_w) * 4                                   # f32 out
        + (td * wd_pad + h * td * (2 + c)) * 4)                              # scratch
    vmem_limit = int(min(max(2 * vmem_bytes + (4 << 20), 16 << 20), 100 << 20))

    out_slab, qk = pl.pallas_call(
        kernel,
        out_shape=[
            jax.ShapeDtypeStruct((n_pad, out_w), jnp.float32),
            jax.ShapeDtypeStruct((n_pad, qk_w), jnp.float32),
        ],
        grid_spec=pltpu.PrefetchScalarGridSpec(
            num_scalar_prefetch=0,
            grid=grid,
            in_specs=[
                pl.BlockSpec((td, f_pad), lambda i, j: (i, 0)),    # x (dst tile)
                pl.BlockSpec((ts, f_pad), lambda i, j: (j, 0)),    # x (src tile)
                pl.BlockSpec((f_pad, wd_pad), lambda i, j: (0, 0)),
                pl.BlockSpec((f_pad, ws_pad), lambda i, j: (0, 0)),
                pl.BlockSpec((td, ts), lambda i, j: (i, j)),       # mask tile (int8)
            ],
            out_specs=[
                pl.BlockSpec((td, out_w), lambda i, j: (i, 0)),
                pl.BlockSpec((td, qk_w), lambda i, j: (i, 0)),
            ],
            scratch_shapes=[
                pltpu.VMEM((td, wd_pad), jnp.float32),   # dst-tile q|skip|k proj
                pltpu.VMEM((h, td, 1), jnp.float32),     # running max
                pltpu.VMEM((h, td, 1), jnp.float32),     # running denominator
                pltpu.VMEM((h, td, c), jnp.float32),     # running numerator
            ]),
        compiler_params=pltpu.CompilerParams(
            dimension_semantics=("parallel", "arbitrary"),
            vmem_limit_bytes=vmem_limit),
    )(x_aug, x_aug, w_dst, w_src, mask)

    out = out_slab[:n, :c]
    lse = out_slab[:n, c:c + h]                    # [N, H] per-head logsumexp
    q = qk[:n, :hc].reshape(n, h, c)
    k = qk[:n, hc:2 * hc].reshape(n, h, c)

    # Per-edge attention weights [E, H]: O(E) gather + VPU math (no O(N^2) HBM).
    # TODO(synk): move this gather into a scalar-prefetched Pallas pass for huge E.
    s_e = jnp.sum(q[dst_idx] * k[src_idx], axis=-1) * scale
    att_weights = jnp.exp(s_e - lse[dst_idx])
    return out, edge_index, att_weights


# ----------------------------------------------------------------------------
# Parameter init + pure-JAX reference for a correctness self-check
# ----------------------------------------------------------------------------
def init_params(key, input_dim, conv_feat_dim, heads):
    ks = jax.random.split(key, 8)
    hc = heads * conv_feat_dim
    scale = 0.1
    return {
        "wq": scale * jax.random.normal(ks[0], (input_dim, hc), jnp.float32),
        "bq": scale * jax.random.normal(ks[1], (hc,), jnp.float32),
        "wk": scale * jax.random.normal(ks[2], (input_dim, hc), jnp.float32),
        "bk": scale * jax.random.normal(ks[3], (hc,), jnp.float32),
        "wv": scale * jax.random.normal(ks[4], (input_dim, hc), jnp.float32),
        "bv": scale * jax.random.normal(ks[5], (hc,), jnp.float32),
        "wskip": scale * jax.random.normal(ks[6], (input_dim, conv_feat_dim), jnp.float32),
        "bskip": scale * jax.random.normal(ks[7], (conv_feat_dim,), jnp.float32),
    }


def _reference_forward(x, edge_index, params, n, c, h):
    hi = lax.Precision.HIGHEST
    q = (jnp.dot(x, params["wq"], precision=hi) + params["bq"]).reshape(n, h, c)
    k = (jnp.dot(x, params["wk"], precision=hi) + params["bk"]).reshape(n, h, c)
    v = (jnp.dot(x, params["wv"], precision=hi) + params["bv"]).reshape(n, h, c)
    skip = jnp.dot(x, params["wskip"], precision=hi) + params["bskip"]
    src, dst = edge_index[0], edge_index[1]
    mask = jnp.zeros((n, n), jnp.float32).at[dst, src].set(1.0)
    scores = jnp.einsum("dhc,shc->hds", q, k, precision=hi) / math.sqrt(c)
    sc = scores + jnp.where(mask > 0, 0.0, -1e30)
    m = sc.max(-1, keepdims=True)
    e = jnp.exp(sc - m) * mask
    ssum = e.sum(-1, keepdims=True)
    alpha = e / jnp.where(ssum > 0, ssum, 1.0)
    outh = jnp.einsum("hds,shc->dhc", alpha, v, precision=hi)
    y = outh.mean(axis=1) + skip
    y = jnp.where(y >= 0, y, 0.01 * y)
    return y, alpha[:, dst, src].T


if __name__ == "__main__":
    key = jax.random.PRNGKey(0)
    k_x, k_p = jax.random.split(key)

    # Small shapes implied by the module: N nodes, input_dim features,
    # conv_feat_dim output channels, 2 attention heads.
    N, INPUT_DIM, CONV_FEAT_DIM, HEADS = 8, 16, 32, 2

    x = jax.random.normal(k_x, (N, INPUT_DIM), jnp.float32)

    # Deterministic directed edges (unique src->dst pairs): ring + chords.
    src = jnp.array([0, 1, 2, 3, 4, 5, 6, 7, 0, 2, 4, 6], dtype=jnp.int32)
    dst = jnp.array([1, 2, 3, 4, 5, 6, 7, 0, 4, 6, 0, 2], dtype=jnp.int32)
    edge_index = jnp.stack([src, dst])   # [2, E]

    params = init_params(k_p, INPUT_DIM, CONV_FEAT_DIM, HEADS)

    forward = jax.jit(functools.partial(
        gcn_transformer_forward,
        num_nodes=N, conv_feat_dim=CONV_FEAT_DIM, heads=HEADS))

    out, att_edge_idx, att_weights = forward(x, edge_index, params)
    jax.block_until_ready((out, att_edge_idx, att_weights))

    assert out.shape == (N, CONV_FEAT_DIM)
    assert att_edge_idx.shape == (2, 12)
    assert att_weights.shape == (12, HEADS)

    # Correctness self-check against a pure-JAX f32 reference (kernel uses bf16 MXU).
    ref_out, ref_att = _reference_forward(x, edge_index, params, N, CONV_FEAT_DIM, HEADS)
    assert bool(jnp.allclose(out, ref_out, atol=3e-2, rtol=3e-2))
    assert bool(jnp.allclose(att_weights, ref_att, atol=3e-2, rtol=3e-2))

    print("KERNEL_OK")
</pallas_src>

<mosaic_0001>
module attributes {stable_mosaic.version = 11 : i64} {
  func.func @_gcn_transformer_kernel(%arg0: i32, %arg1: i32, %arg2: memref<8x32xbf16, #tpu.memory_space<vmem>>, %arg3: memref<8x32xbf16, #tpu.memory_space<vmem>>, %arg4: memref<32x256xbf16, #tpu.memory_space<vmem>>, %arg5: memref<32x128xbf16, #tpu.memory_space<vmem>>, %arg6: memref<8x8xi8, #tpu.memory_space<vmem>>, %arg7: memref<8x128xf32, #tpu.memory_space<vmem>>, %arg8: memref<8x128xf32, #tpu.memory_space<vmem>>, %arg9: memref<8x256xf32, #tpu.memory_space<vmem>>, %arg10: memref<2x8x1xf32, #tpu.memory_space<vmem>>, %arg11: memref<2x8x1xf32, #tpu.memory_space<vmem>>, %arg12: memref<2x8x32xf32, #tpu.memory_space<vmem>>) attributes {dimension_semantics = [#tpu.dimension_semantics<parallel>, #tpu.dimension_semantics<arbitrary>], iteration_bounds = array<i64: 1, 1>, scalar_prefetch = 0 : i64, scratch_operands = 4 : i64, tpu.core_type = #tpu.core_type<tc>, window_params = [{transform_indices = @transform_0, window_bounds = array<i64: 8, 32>}, {transform_indices = @transform_1, window_bounds = array<i64: 8, 32>}, {pipeline_mode = #tpu.pipeline_mode<synchronous>, transform_indices = @transform_2, window_bounds = array<i64: 32, 256>}, {pipeline_mode = #tpu.pipeline_mode<synchronous>, transform_indices = @transform_3, window_bounds = array<i64: 32, 128>}, {transform_indices = @transform_4, window_bounds = array<i64: 8, 8>}, {transform_indices = @transform_5, window_bounds = array<i64: 8, 128>}, {transform_indices = @transform_6, window_bounds = array<i64: 8, 128>}]} {
    %c0_i32 = arith.constant 0 : i32
    %0 = arith.cmpi eq, %arg1, %c0_i32 : i32
    %1 = arith.extui %0 : i1 to i32
    %c0_i32_0 = arith.constant 0 : i32
    %2 = arith.cmpi ne, %1, %c0_i32_0 : i32
    scf.if %2 {
      %c0_58 = arith.constant 0 : index
      %c0_59 = arith.constant 0 : index
      %101 = vector.load %arg2[%c0_58, %c0_59] : memref<8x32xbf16, #tpu.memory_space<vmem>>, vector<8x32xbf16>
      %c0_60 = arith.constant 0 : index
      %c0_61 = arith.constant 0 : index
      %102 = vector.load %arg4[%c0_60, %c0_61] : memref<32x256xbf16, #tpu.memory_space<vmem>>, vector<32x256xbf16>
      %cst_62 = arith.constant dense<0.000000e+00> : vector<8x256xf32>
      %103 = tpu.matmul %101, %102, %cst_62 {dimension_numbers = #tpu.dot_dimension_numbers<[1], [0], [0], [1], [0, 0, 1, 1], [], []>} : vector<8x32xbf16>, vector<32x256xbf16>, vector<8x256xf32> -> vector<8x256xf32>
      %c0_63 = arith.constant 0 : index
      %c0_64 = arith.constant 0 : index
      %104 = vector.load %arg9[%c0_63, %c0_64] : memref<8x256xf32, #tpu.memory_space<vmem>>, vector<8x256xf32>
      tpu.vector_store %arg9[%c0_63, %c0_64], %103 {strides = array<i32>} : memref<8x256xf32, #tpu.memory_space<vmem>>, vector<8x256xf32>,
      %cst_65 = arith.constant 0xFF800000 : f32
      %105 = vector.broadcast %cst_65 : f32 to vector<2x8x1xf32>
      %c0_66 = arith.constant 0 : index
      %c0_67 = arith.constant 0 : index
      %c0_68 = arith.constant 0 : index
      %106 = vector.load %arg10[%c0_66, %c0_67, %c0_68] : memref<2x8x1xf32, #tpu.memory_space<vmem>>, vector<2x8x1xf32>
      tpu.vector_store %arg10[%c0_66, %c0_67, %c0_68], %105 {strides = array<i32>} : memref<2x8x1xf32, #tpu.memory_space<vmem>>, vector<2x8x1xf32>,
      %cst_69 = arith.constant 0.000000e+00 : f32
      %107 = vector.broadcast %cst_69 : f32 to vector<2x8x1xf32>
      %c0_70 = arith.constant 0 : index
      %c0_71 = arith.constant 0 : index
      %c0_72 = arith.constant 0 : index
      %108 = vector.load %arg11[%c0_70, %c0_71, %c0_72] : memref<2x8x1xf32, #tpu.memory_space<vmem>>, vector<2x8x1xf32>
      tpu.vector_store %arg11[%c0_70, %c0_71, %c0_72], %107 {strides = array<i32>} : memref<2x8x1xf32, #tpu.memory_space<vmem>>, vector<2x8x1xf32>,
      %cst_73 = arith.constant 0.000000e+00 : f32
      %109 = vector.broadcast %cst_73 : f32 to vector<2x8x32xf32>
      %c0_74 = arith.constant 0 : index
      %c0_75 = arith.constant 0 : index
      %c0_76 = arith.constant 0 : index
      %110 = vector.load %arg12[%c0_74, %c0_75, %c0_76] : memref<2x8x32xf32, #tpu.memory_space<vmem>>, vector<2x8x32xf32>
      tpu.vector_store %arg12[%c0_74, %c0_75, %c0_76], %109 {strides = array<i32>} : memref<2x8x32xf32, #tpu.memory_space<vmem>>, vector<2x8x32xf32>,
    } else {
    }
    %c0 = arith.constant 0 : index
    %c0_1 = arith.constant 0 : index
    %3 = vector.load %arg3[%c0, %c0_1] : memref<8x32xbf16, #tpu.memory_space<vmem>>, vector<8x32xbf16>
    %c0_2 = arith.constant 0 : index
    %c0_3 = arith.constant 0 : index
    %4 = vector.load %arg5[%c0_2, %c0_3] : memref<32x128xbf16, #tpu.memory_space<vmem>>, vector<32x128xbf16>
    %cst = arith.constant dense<0.000000e+00> : vector<8x128xf32>
    %5 = tpu.matmul %3, %4, %cst {dimension_numbers = #tpu.dot_dimension_numbers<[1], [0], [0], [1], [0, 0, 1, 1], [], []>} : vector<8x32xbf16>, vector<32x128xbf16>, vector<8x128xf32> -> vector<8x128xf32>
    %c0_4 = arith.constant 0 : index
    %c0_5 = arith.constant 0 : index
    %6 = vector.load %arg6[%c0_4, %c0_5] : memref<8x8xi8, #tpu.memory_space<vmem>>, vector<8x8xi8>
    %7 = arith.sitofp %6 : vector<8x8xi8> to vector<8x8xf32>
    %cst_6 = arith.constant 1.000000e+00 : f32
    %8 = vector.broadcast %cst_6 : f32 to vector<8x8xf32>
    %9 = arith.subf %7, %8 : vector<8x8xf32>
    %cst_7 = arith.constant 1.000000e+30 : f32
    %10 = vector.broadcast %cst_7 : f32 to vector<8x8xf32>
    %11 = arith.mulf %9, %10 : vector<8x8xf32>
    %c0_8 = arith.constant 0 : index
    %c0_9 = arith.constant 0 : index
    %12 = vector.load %arg9[%c0_8, %c0_9] : memref<8x256xf32, #tpu.memory_space<vmem>>, vector<8x32xf32>
    %13 = arith.truncf %12 : vector<8x32xf32> to vector<8x32xbf16>
    %14 = vector.extract_strided_slice %5 {offsets = [0, 0], sizes = [8, 32], strides = [1, 1]} : vector<8x128xf32> to vector<8x32xf32>
    %15 = arith.truncf %14 : vector<8x32xf32> to vector<8x32xbf16>
    %16 = vector.extract_strided_slice %5 {offsets = [0, 64], sizes = [8, 32], strides = [1, 1]} : vector<8x128xf32> to vector<8x32xf32>
    %17 = arith.truncf %16 : vector<8x32xf32> to vector<8x32xbf16>
    %cst_10 = arith.constant dense<0.000000e+00> : vector<8x8xf32>
    %18 = tpu.matmul %13, %15, %cst_10 {dimension_numbers = #tpu.dot_dimension_numbers<[1], [1], [0], [0], [0, 0, 1, 0], [], []>} : vector<8x32xbf16>, vector<8x32xbf16>, vector<8x8xf32> -> vector<8x8xf32>
    %cst_11 = arith.constant 0.176776692 : f32
    %19 = vector.broadcast %cst_11 : f32 to vector<8x8xf32>
    %20 = arith.mulf %18, %19 : vector<8x8xf32>
    %21 = arith.addf %20, %11 : vector<8x8xf32>
    %c0_12 = arith.constant 0 : index
    %c0_13 = arith.constant 0 : index
    %c0_14 = arith.constant 0 : index
    %22 = vector.load %arg10[%c0_12, %c0_13, %c0_14] : memref<2x8x1xf32, #tpu.memory_space<vmem>>, vector<1x8x1xf32>
    %23 = vector.shape_cast %22 : vector<1x8x1xf32> to vector<8x1xf32>
    %cst_15 = arith.constant dense<0xFF800000> : vector<8xf32>
    %24 = vector.multi_reduction <maximumf>, %21, %cst_15 [1] : vector<8x8xf32> to vector<8xf32>
    %25 = vector.shape_cast %24 : vector<8xf32> to vector<8x1xf32>
    %26 = arith.maximumf %23, %25 : vector<8x1xf32>
    %27 = vector.broadcast %26 : vector<8x1xf32> to vector<8x8xf32>
    %28 = arith.subf %21, %27 : vector<8x8xf32>
    %29 = math.exp %28 : vector<8x8xf32>
    %30 = arith.mulf %29, %7 : vector<8x8xf32>
    %31 = arith.subf %23, %26 : vector<8x1xf32>
    %32 = math.exp %31 : vector<8x1xf32>
    %c0_16 = arith.constant 0 : index
    %c0_17 = arith.constant 0 : index
    %c0_18 = arith.constant 0 : index
    %33 = vector.load %arg11[%c0_16, %c0_17, %c0_18] : memref<2x8x1xf32, #tpu.memory_space<vmem>>, vector<1x8x1xf32>
    %34 = vector.shape_cast %33 : vector<1x8x1xf32> to vector<8x1xf32>
    %35 = arith.mulf %32, %34 : vector<8x1xf32>
    %cst_19 = arith.constant dense<0.000000e+00> : vector<8xf32>
    %36 = vector.multi_reduction <add>, %30, %cst_19 [1] : vector<8x8xf32> to vector<8xf32>
    %37 = vector.shape_cast %36 : vector<8xf32> to vector<8x1xf32>
    %38 = arith.addf %35, %37 : vector<8x1xf32>
    %c0_20 = arith.constant 0 : index
    %c0_21 = arith.constant 0 : index
    %c0_22 = arith.constant 0 : index
    %39 = vector.load %arg11[%c0_20, %c0_21, %c0_22] : memref<2x8x1xf32, #tpu.memory_space<vmem>>, vector<1x8x1xf32>
    %40 = vector.shape_cast %39 : vector<1x8x1xf32> to vector<8x1xf32>
    %41 = vector.shape_cast %38 : vector<8x1xf32> to vector<1x8x1xf32>
    tpu.vector_store %arg11[%c0_20, %c0_21, %c0_22], %41 {strides = array<i32>} : memref<2x8x1xf32, #tpu.memory_space<vmem>>, vector<1x8x1xf32>,
    %c0_23 = arith.constant 0 : index
    %c0_24 = arith.constant 0 : index
    %c0_25 = arith.constant 0 : index
    %42 = vector.load %arg12[%c0_23, %c0_24, %c0_25] : memref<2x8x32xf32, #tpu.memory_space<vmem>>, vector<1x8x32xf32>
    %43 = vector.shape_cast %42 : vector<1x8x32xf32> to vector<8x32xf32>
    %44 = vector.broadcast %32 : vector<8x1xf32> to vector<8x32xf32>
    %45 = arith.mulf %44, %43 : vector<8x32xf32>
    %46 = arith.truncf %30 : vector<8x8xf32> to vector<8x8xbf16>
    %cst_26 = arith.constant dense<0.000000e+00> : vector<8x32xf32>
    %47 = tpu.matmul %46, %17, %cst_26 {dimension_numbers = #tpu.dot_dimension_numbers<[1], [0], [0], [1], [0, 0, 1, 1], [], []>} : vector<8x8xbf16>, vector<8x32xbf16>, vector<8x32xf32> -> vector<8x32xf32>
    %48 = arith.addf %45, %47 : vector<8x32xf32>
    %c0_27 = arith.constant 0 : index
    %c0_28 = arith.constant 0 : index
    %c0_29 = arith.constant 0 : index
    %49 = vector.load %arg12[%c0_27, %c0_28, %c0_29] : memref<2x8x32xf32, #tpu.memory_space<vmem>>, vector<1x8x32xf32>
    %50 = vector.shape_cast %49 : vector<1x8x32xf32> to vector<8x32xf32>
    %51 = vector.shape_cast %48 : vector<8x32xf32> to vector<1x8x32xf32>
    tpu.vector_store %arg12[%c0_27, %c0_28, %c0_29], %51 {strides = array<i32>} : memref<2x8x32xf32, #tpu.memory_space<vmem>>, vector<1x8x32xf32>,
    %c0_30 = arith.constant 0 : index
    %c0_31 = arith.constant 0 : index
    %c0_32 = arith.constant 0 : index
    %52 = vector.load %arg10[%c0_30, %c0_31, %c0_32] : memref<2x8x1xf32, #tpu.memory_space<vmem>>, vector<1x8x1xf32>
    %53 = vector.shape_cast %52 : vector<1x8x1xf32> to vector<8x1xf32>
    %54 = vector.shape_cast %26 : vector<8x1xf32> to vector<1x8x1xf32>
    tpu.vector_store %arg10[%c0_30, %c0_31, %c0_32], %54 {strides = array<i32>} : memref<2x8x1xf32, #tpu.memory_space<vmem>>, vector<1x8x1xf32>,
    %c0_33 = arith.constant 0 : index
    %c32 = arith.constant 32 : index
    %55 = vector.load %arg9[%c0_33, %c32] : memref<8x256xf32, #tpu.memory_space<vmem>>, vector<8x32xf32>
    %56 = arith.truncf %55 : vector<8x32xf32> to vector<8x32xbf16>
    %57 = vector.extract_strided_slice %5 {offsets = [0, 32], sizes = [8, 32], strides = [1, 1]} : vector<8x128xf32> to vector<8x32xf32>
    %58 = arith.truncf %57 : vector<8x32xf32> to vector<8x32xbf16>
    %59 = vector.extract_strided_slice %5 {offsets = [0, 96], sizes = [8, 32], strides = [1, 1]} : vector<8x128xf32> to vector<8x32xf32>
    %60 = arith.truncf %59 : vector<8x32xf32> to vector<8x32xbf16>
    %cst_34 = arith.constant dense<0.000000e+00> : vector<8x8xf32>
    %61 = tpu.matmul %56, %58, %cst_34 {dimension_numbers = #tpu.dot_dimension_numbers<[1], [1], [0], [0], [0, 0, 1, 0], [], []>} : vector<8x32xbf16>, vector<8x32xbf16>, vector<8x8xf32> -> vector<8x8xf32>
    %cst_35 = arith.constant 0.176776692 : f32
    %62 = vector.broadcast %cst_35 : f32 to vector<8x8xf32>
    %63 = arith.mulf %61, %62 : vector<8x8xf32>
    %64 = arith.addf %63, %11 : vector<8x8xf32>
    %c1 = arith.constant 1 : index
    %c0_36 = arith.constant 0 : index
    %c0_37 = arith.constant 0 : index
    %65 = vector.load %arg10[%c1, %c0_36, %c0_37] : memref<2x8x1xf32, #tpu.memory_space<vmem>>, vector<1x8x1xf32>
    %66 = vector.shape_cast %65 : vector<1x8x1xf32> to vector<8x1xf32>
    %cst_38 = arith.constant dense<0xFF800000> : vector<8xf32>
    %67 = vector.multi_reduction <maximumf>, %64, %cst_38 [1] : vector<8x8xf32> to vector<8xf32>
    %68 = vector.shape_cast %67 : vector<8xf32> to vector<8x1xf32>
    %69 = arith.maximumf %66, %68 : vector<8x1xf32>
    %70 = vector.broadcast %69 : vector<8x1xf32> to vector<8x8xf32>
    %71 = arith.subf %64, %70 : vector<8x8xf32>
    %72 = math.exp %71 : vector<8x8xf32>
    %73 = arith.mulf %72, %7 : vector<8x8xf32>
    %74 = arith.subf %66, %69 : vector<8x1xf32>
    %75 = math.exp %74 : vector<8x1xf32>
    %c1_39 = arith.constant 1 : index
    %c0_40 = arith.constant 0 : index
    %c0_41 = arith.constant 0 : index
    %76 = vector.load %arg11[%c1_39, %c0_40, %c0_41] : memref<2x8x1xf32, #tpu.memory_space<vmem>>, vector<1x8x1xf32>
    %77 = vector.shape_cast %76 : vector<1x8x1xf32> to vector<8x1xf32>
    %78 = arith.mulf %75, %77 : vector<8x1xf32>
    %cst_42 = arith.constant dense<0.000000e+00> : vector<8xf32>
    %79 = vector.multi_reduction <add>, %73, %cst_42 [1] : vector<8x8xf32> to vector<8xf32>
    %80 = vector.shape_cast %79 : vector<8xf32> to vector<8x1xf32>
    %81 = arith.addf %78, %80 : vector<8x1xf32>
    %c1_43 = arith.constant 1 : index
    %c0_44 = arith.constant 0 : index
    %c0_45 = arith.constant 0 : index
    %82 = vector.load %arg11[%c1_43, %c0_44, %c0_45] : memref<2x8x1xf32, #tpu.memory_space<vmem>>, vector<1x8x1xf32>
    %83 = vector.shape_cast %82 : vector<1x8x1xf32> to vector<8x1xf32>
    %84 = vector.shape_cast %81 : vector<8x1xf32> to vector<1x8x1xf32>
    tpu.vector_store %arg11[%c1_43, %c0_44, %c0_45], %84 {strides = array<i32>} : memref<2x8x1xf32, #tpu.memory_space<vmem>>, vector<1x8x1xf32>,
    %c1_46 = arith.constant 1 : index
    %c0_47 = arith.constant 0 : index
    %c0_48 = arith.constant 0 : index
    %85 = vector.load %arg12[%c1_46, %c0_47, %c0_48] : memref<2x8x32xf32, #tpu.memory_space<vmem>>, vector<1x8x32xf32>
    %86 = vector.shape_cast %85 : vector<1x8x32xf32> to vector<8x32xf32>
    %87 = vector.broadcast %75 : vector<8x1xf32> to vector<8x32xf32>
    %88 = arith.mulf %87, %86 : vector<8x32xf32>
    %89 = arith.truncf %73 : vector<8x8xf32> to vector<8x8xbf16>
    %cst_49 = arith.constant dense<0.000000e+00> : vector<8x32xf32>
    %90 = tpu.matmul %89, %60, %cst_49 {dimension_numbers = #tpu.dot_dimension_numbers<[1], [0], [0], [1], [0, 0, 1, 1], [], []>} : vector<8x8xbf16>, vector<8x32xbf16>, vector<8x32xf32> -> vector<8x32xf32>
    %91 = arith.addf %88, %90 : vector<8x32xf32>
    %c1_50 = arith.constant 1 : index
    %c0_51 = arith.constant 0 : index
    %c0_52 = arith.constant 0 : index
    %92 = vector.load %arg12[%c1_50, %c0_51, %c0_52] : memref<2x8x32xf32, #tpu.memory_space<vmem>>, vector<1x8x32xf32>
    %93 = vector.shape_cast %92 : vector<1x8x32xf32> to vector<8x32xf32>
    %94 = vector.shape_cast %91 : vector<8x32xf32> to vector<1x8x32xf32>
    tpu.vector_store %arg12[%c1_50, %c0_51, %c0_52], %94 {strides = array<i32>} : memref<2x8x32xf32, #tpu.memory_space<vmem>>, vector<1x8x32xf32>,
    %c1_53 = arith.constant 1 : index
    %c0_54 = arith.constant 0 : index
    %c0_55 = arith.constant 0 : index
    %95 = vector.load %arg10[%c1_53, %c0_54, %c0_55] : memref<2x8x1xf32, #tpu.memory_space<vmem>>, vector<1x8x1xf32>
    %96 = vector.shape_cast %95 : vector<1x8x1xf32> to vector<8x1xf32>
    %97 = vector.shape_cast %69 : vector<8x1xf32> to vector<1x8x1xf32>
    tpu.vector_store %arg10[%c1_53, %c0_54, %c0_55], %97 {strides = array<i32>} : memref<2x8x1xf32, #tpu.memory_space<vmem>>, vector<1x8x1xf32>,
    %c0_i32_56 = arith.constant 0 : i32
    %98 = arith.cmpi eq, %arg1, %c0_i32_56 : i32
    %99 = arith.extui %98 : i1 to i32
    %c0_i32_57 = arith.constant 0 : i32
    %100 = arith.cmpi ne, %99, %c0_i32_57 : i32
    scf.if %100 {
      %c0_58 = arith.constant 0 : index
      %c64 = arith.constant 64 : index
      %101 = vector.load %arg9[%c0_58, %c64] : memref<8x256xf32, #tpu.memory_space<vmem>>, vector<8x32xf32>
      %c0_59 = arith.constant 0 : index
      %c0_60 = arith.constant 0 : index
      %c0_61 = arith.constant 0 : index
      %102 = vector.load %arg11[%c0_59, %c0_60, %c0_61] : memref<2x8x1xf32, #tpu.memory_space<vmem>>, vector<1x8x1xf32>
      %103 = vector.shape_cast %102 : vector<1x8x1xf32> to vector<8x1xf32>
      %cst_62 = arith.constant 0.000000e+00 : f32
      %104 = vector.broadcast %cst_62 : f32 to vector<8x1xf32>
      %105 = arith.cmpf ogt, %103, %104 : vector<8x1xf32>
      %cst_63 = arith.constant 1.000000e+00 : f32
      %106 = vector.broadcast %cst_63 : f32 to vector<8x1xf32>
      %107 = arith.select %105, %103, %106 : vector<8x1xi1>, vector<8x1xf32>
      %c0_64 = arith.constant 0 : index
      %c0_65 = arith.constant 0 : index
      %c0_66 = arith.constant 0 : index
      %108 = vector.load %arg12[%c0_64, %c0_65, %c0_66] : memref<2x8x32xf32, #tpu.memory_space<vmem>>, vector<1x8x32xf32>
      %109 = vector.shape_cast %108 : vector<1x8x32xf32> to vector<8x32xf32>
      %110 = tpu.reciprocal %107 {approx = true} : vector<8x1xf32> -> vector<8x1xf32>
      %111 = vector.broadcast %110 : vector<8x1xf32> to vector<8x32xf32>
      %112 = arith.mulf %109, %111 : vector<8x32xf32>
      %113 = arith.addf %101, %112 : vector<8x32xf32>
      %c0_67 = arith.constant 0 : index
      %c0_68 = arith.constant 0 : index
      %c0_69 = arith.constant 0 : index
      %114 = vector.load %arg10[%c0_67, %c0_68, %c0_69] : memref<2x8x1xf32, #tpu.memory_space<vmem>>, vector<1x8x1xf32>
      %115 = vector.shape_cast %114 : vector<1x8x1xf32> to vector<8x1xf32>
      %116 = math.log %107 : vector<8x1xf32>
      %117 = arith.addf %115, %116 : vector<8x1xf32>
      %c1_70 = arith.constant 1 : index
      %c0_71 = arith.constant 0 : index
      %c0_72 = arith.constant 0 : index
      %118 = vector.load %arg11[%c1_70, %c0_71, %c0_72] : memref<2x8x1xf32, #tpu.memory_space<vmem>>, vector<1x8x1xf32>
      %119 = vector.shape_cast %118 : vector<1x8x1xf32> to vector<8x1xf32>
      %cst_73 = arith.constant 0.000000e+00 : f32
      %120 = vector.broadcast %cst_73 : f32 to vector<8x1xf32>
      %121 = arith.cmpf ogt, %119, %120 : vector<8x1xf32>
      %cst_74 = arith.constant 1.000000e+00 : f32
      %122 = vector.broadcast %cst_74 : f32 to vector<8x1xf32>
      %123 = arith.select %121, %119, %122 : vector<8x1xi1>, vector<8x1xf32>
      %c1_75 = arith.constant 1 : index
      %c0_76 = arith.constant 0 : index
      %c0_77 = arith.constant 0 : index
      %124 = vector.load %arg12[%c1_75, %c0_76, %c0_77] : memref<2x8x32xf32, #tpu.memory_space<vmem>>, vector<1x8x32xf32>
      %125 = vector.shape_cast %124 : vector<1x8x32xf32> to vector<8x32xf32>
      %126 = tpu.reciprocal %123 {approx = true} : vector<8x1xf32> -> vector<8x1xf32>
      %127 = vector.broadcast %126 : vector<8x1xf32> to vector<8x32xf32>
      %128 = arith.mulf %125, %127 : vector<8x32xf32>
      %129 = arith.addf %113, %128 : vector<8x32xf32>
      %c1_78 = arith.constant 1 : index
      %c0_79 = arith.constant 0 : index
      %c0_80 = arith.constant 0 : index
      %130 = vector.load %arg10[%c1_78, %c0_79, %c0_80] : memref<2x8x1xf32, #tpu.memory_space<vmem>>, vector<1x8x1xf32>
      %131 = vector.shape_cast %130 : vector<1x8x1xf32> to vector<8x1xf32>
      %132 = math.log %123 : vector<8x1xf32>
      %133 = arith.addf %131, %132 : vector<8x1xf32>
      %cst_81 = arith.constant 0.000000e+00 : f32
      %134 = vector.broadcast %cst_81 : f32 to vector<8x32xf32>
      %135 = arith.cmpf oge, %129, %134 : vector<8x32xf32>
      %cst_82 = arith.constant 0.00999999977 : f32
      %136 = vector.broadcast %cst_82 : f32 to vector<8x32xf32>
      %137 = arith.mulf %136, %129 : vector<8x32xf32>
      %138 = arith.select %135, %129, %137 : vector<8x32xi1>, vector<8x32xf32>
      %cst_83 = arith.constant 0.000000e+00 : f32
      %139 = vector.broadcast %cst_83 : f32 to vector<8x94xf32>
      %140 = tpu.concatenate %138, %117, %133, %139 in 1 : vector<8x32xf32>, vector<8x1xf32>, vector<8x1xf32>, vector<8x94xf32> -> vector<8x128xf32>
      %c0_84 = arith.constant 0 : index
      %c0_85 = arith.constant 0 : index
      %141 = vector.load %arg7[%c0_84, %c0_85] : memref<8x128xf32, #tpu.memory_space<vmem>>, vector<8x128xf32>
      tpu.vector_store %arg7[%c0_84, %c0_85], %140 {strides = array<i32>} : memref<8x128xf32, #tpu.memory_space<vmem>>, vector<8x128xf32>,
      %c0_86 = arith.constant 0 : index
      %c0_87 = arith.constant 0 : index
      %142 = vector.load %arg9[%c0_86, %c0_87] : memref<8x256xf32, #tpu.memory_space<vmem>>, vector<8x64xf32>
      %c0_88 = arith.constant 0 : index
      %c96 = arith.constant 96 : index
      %143 = vector.load %arg9[%c0_88, %c96] : memref<8x256xf32, #tpu.memory_space<vmem>>, vector<8x64xf32>
      %144 = tpu.concatenate %142, %143 in 1 : vector<8x64xf32>, vector<8x64xf32> -> vector<8x128xf32>
      %c0_89 = arith.constant 0 : index
      %c0_90 = arith.constant 0 : index
      %145 = vector.load %arg8[%c0_89, %c0_90] : memref<8x128xf32, #tpu.memory_space<vmem>>, vector<8x128xf32>
      tpu.vector_store %arg8[%c0_89, %c0_90], %144 {strides = array<i32>} : memref<8x128xf32, #tpu.memory_space<vmem>>, vector<8x128xf32>,
    } else {
    }
    return
  }
  func.func @transform_0(%arg0: i32, %arg1: i32) -> (i32, i32) {
    %c0_i32 = arith.constant 0 : i32
    %c0_i32_0 = arith.constant 0 : i32
    return %arg0, %c0_i32 : i32, i32
  }
  func.func @transform_1(%arg0: i32, %arg1: i32) -> (i32, i32) {
    %c0_i32 = arith.constant 0 : i32
    %c0_i32_0 = arith.constant 0 : i32
    return %arg1, %c0_i32 : i32, i32
  }
  func.func @transform_2(%arg0: i32, %arg1: i32) -> (i32, i32) {
    %c0_i32 = arith.constant 0 : i32
    %c0_i32_0 = arith.constant 0 : i32
    %c0_i32_1 = arith.constant 0 : i32
    return %c0_i32, %c0_i32_0 : i32, i32
  }
  func.func @transform_3(%arg0: i32, %arg1: i32) -> (i32, i32) {
    %c0_i32 = arith.constant 0 : i32
    %c0_i32_0 = arith.constant 0 : i32
    %c0_i32_1 = arith.constant 0 : i32
    return %c0_i32, %c0_i32_0 : i32, i32
  }
  func.func @transform_4(%arg0: i32, %arg1: i32) -> (i32, i32) {
    %c0_i32 = arith.constant 0 : i32
    return %arg0, %arg1 : i32, i32
  }
  func.func @transform_5(%arg0: i32, %arg1: i32) -> (i32, i32) {
    %c0_i32 = arith.constant 0 : i32
    %c0_i32_0 = arith.constant 0 : i32
    return %arg0, %c0_i32 : i32, i32
  }
  func.func @transform_6(%arg0: i32, %arg1: i32) -> (i32, i32) {
    %c0_i32 = arith.constant 0 : i32
    %c0_i32_0 = arith.constant 0 : i32
    return %arg0, %c0_i32 : i32, i32
  }
}

</mosaic_0001>

<llo_original>
// kernel: gcn_transformer_forward.1
$region0: #{gcn_transformer_forward.1}
  #allocation0 [shape = 'u32[]', space=smem, size = 0x4, offset = 0x4, fixed_abs, tag = 'smem constant byte address 0x4 - core index']
  #allocation1 [shape = 'u32[144,128]{1,0:T(1,128)}', space=vmem, size = 0x12000, scoped, tag = 'internal scratch']
  #allocation2 [shape = 'f32[8,256]{1,0:T(8,128)}', space=vmem, size = 0x2000, scoped, tag = 'scratch operand']
  #allocation3 [shape = 'f32[2,8,1]{2,1,0:T(8,128)}', space=vmem, size = 0x2000, scoped, tag = 'scratch operand']
  #allocation4 [shape = 'f32[2,8,1]{2,1,0:T(8,128)}', space=vmem, size = 0x2000, scoped, tag = 'scratch operand']
  #allocation5 [shape = 'f32[2,8,32]{2,1,0:T(8,128)}', space=vmem, size = 0x2000, scoped, tag = 'scratch operand']
  %s0 = inlined_call_operand.vmem [shape: bf16[8,32], index: 0, kind: input, shape index: {}, may-alias: {0,1}]
  %s1 = inlined_call_operand.vmem [shape: bf16[8,32], index: 1, kind: input, shape index: {}, may-alias: {0,1}]
  %s2 = inlined_call_operand.vmem [shape: bf16[32,256], index: 2, kind: input, shape index: {}]
  %s3 = inlined_call_operand.vmem [shape: bf16[32,128], index: 3, kind: input, shape index: {}]
  %s4 = inlined_call_operand.vmem [shape: s8[8,8], index: 4, kind: input, shape index: {}]
  %s5 = inlined_call_operand.vmem [shape: f32[8,128], index: 5, kind: output, shape index: {0}]
  %s6 = inlined_call_operand.vmem [shape: f32[8,128], index: 6, kind: output, shape index: {1}]
  %7 = xla_tuple %s5, %s6
  %s8 = sld [smem:[#allocation0]]
  $region46: #{gcn_transformer_forward.1} parent=0
    _
  %s10 = ssub.s32 1, %s8
  %s11 = scalar_select 0, %s10, %s8
  // Predicated region
  $region2: #{gcn_transformer_forward.1} parent=0 // pred_check
    _
  $region3: #{gcn_transformer_forward.1} parent=0 // pred_check_branch
    %13 = sbr.rel (0) target = $region5
  $region4: #{gcn_transformer_forward.1} parent=0 // pred_region
    _
  $region5: #{gcn_transformer_forward.1} parent=0 // pred_fallthru
    _
  // Predicated region
  $region6: #{gcn_transformer_forward.1} parent=0 // pred_check
    _
  $region7: #{gcn_transformer_forward.1} parent=0 // pred_check_branch
    %15 = sbr.rel (0) target = $region9
  $region8: #{gcn_transformer_forward.1} parent=0 // pred_region
    _
  $region9: #{gcn_transformer_forward.1} parent=0 // pred_fallthru
    _
  // Predicated region
  $region10: #{gcn_transformer_forward.1} parent=0 // pred_check
    _
  $region11: #{gcn_transformer_forward.1} parent=0 // pred_check_branch
    %17 = sbr.rel (0) target = $region13
  $region12: #{gcn_transformer_forward.1} parent=0 // pred_region
    _
  $region13: #{gcn_transformer_forward.1} parent=0 // pred_fallthru
    _
  // Predicated region
  $region14: #{gcn_transformer_forward.1} parent=0 // pred_check
    _
  $region15: #{gcn_transformer_forward.1} parent=0 // pred_check_branch
    %19 = sbr.rel (0) target = $region17
  $region16: #{gcn_transformer_forward.1} parent=0 // pred_region
    _
  $region17: #{gcn_transformer_forward.1} parent=0 // pred_fallthru
    _
  // Predicated region
  $region18: #{gcn_transformer_forward.1} parent=0 // pred_check
    _
  $region19: #{gcn_transformer_forward.1} parent=0 // pred_check_branch
    %21 = sbr.rel (0) target = $region21
  $region20: #{gcn_transformer_forward.1} parent=0 // pred_region
    _
  $region21: #{gcn_transformer_forward.1} parent=0 // pred_fallthru
    _
  %p23 = scmp.eq.s32.totalorder 0, 0
  // Predicated region
  $region22: #{gcn_transformer_forward.1} parent=0 // pred_check
    %p24 = pneg %p23
  $region23: #{gcn_transformer_forward.1} parent=0 // pred_check_branch
    %26 = sbr.rel (%p24) target = $region25
  $region24: #{gcn_transformer_forward.1} parent=0 // pred_region
    %v27 = vld [vmem:[%s0] sm:$0xf]
    %v28 = vld [vmem:[%s2] sm:$0xff]
    %v29 = vld [vmem:[%s2 + $0x8] sm:$0xff]
    %v30 = vld [vmem:[%s2 + $0x10] sm:$0xff]
    %v31 = vld [vmem:[%s2 + $0x18] sm:$0xff]
    %v36 = vunpack.c.l.b16 %v28
    %v37 = vunpack.c.h.b16 %v28
    %v38 = vunpack.c.l.b16 %v29
    %v39 = vunpack.c.h.b16 %v29
    %v40 = vunpack.c.l.b16 %v30
    %v41 = vunpack.c.h.b16 %v30
    %v42 = vunpack.c.l.b16 %v31
    %v43 = vunpack.c.h.b16 %v31
    %v44 = vpack.c.b16 %v38, %v36
    %v45 = vpack.c.b16 %v39, %v37
    %v46 = vpack.c.b16 %v42, %v40
    %v47 = vpack.c.b16 %v43, %v41
    %vm52 = vcmask 261120
    %v54 = vsel %vm52, %v27, 0
    %56 = vmatprep.subr.bf16.mxu0 0
    %57 = vmatpush1.bf16.msra.mxu0 0
    %58 = vmatprep.subr.bf16.mxu0 0
    %59 = vmatpush1.bf16.msra.mxu0 0
    %60 = vmatprep.subr.bf16.mxu0 0
    %61 = vmatpush1.bf16.msra.mxu0 0
    %62 = vmatprep.subr.bf16.mxu0 0
    %63 = vmatpush1.bf16.msra.mxu0 0
    %64 = vmatprep.subr.bf16.mxu0 0
    %65 = vmatpush1.bf16.msra.mxu0 0
    %66 = vmatprep.subr.bf16.mxu0 0
    %67 = vmatpush1.bf16.msra.mxu0 0
    %68 = vmatprep.subr.bf16.mxu0 %v47
    %69 = vmatpush1.bf16.msra.mxu0 %v46
    %70 = vmatprep.subr.bf16.mxu0 %v45
    %71 = vmatpush1.bf16.msra.mxu0 %v44
    %72 = vmatprep.subr.bf16.mxu0 0
    %73 = vmatpush2.bf16.msra.mxu0 0
    %74 = vmatprep.subr.bf16.mxu0 0
    %75 = vmatpush2.bf16.msra.mxu0 0
    %76 = vmatprep.subr.bf16.mxu0 0
    %77 = vmatpush2.bf16.msra.mxu0 0
    %78 = vmatprep.subr.bf16.mxu0 0
    %79 = vmatpush2.bf16.msra.mxu0 0
    %80 = vmatprep.subr.bf16.mxu0 0
    %81 = vmatpush2.bf16.msra.mxu0 0
    %82 = vmatprep.subr.bf16.mxu0 0
    %83 = vmatpush2.bf16.msra.mxu0 0
    %84 = vmatprep.subr.bf16.mxu0 0
    %85 = vmatpush2.bf16.msra.mxu0 0
    %86 = vmatprep.subr.bf16.mxu0 0
    %87 = vmatpush2.bf16.msra.mxu0 0
    %88 = vmatprep.mubr.bf16.mxu0 0
    %89 = vmatmul.mubr.bf16.gmra.mxu0 %v54
    %v90 = vpop.f32.mrf.mxu0
    %v91 = vadd.f32 0.0, %v90
    %v92 = vpop.f32.mrf.mxu0
    %v93 = vadd.f32 0.0, %v92
    %v94 = vpop.f32.mrf.mxu0
    %v95 = vpop.f32.mrf.mxu0
    %96 = vdwg.mxu0
    %97 = vst [vmem:[#allocation2] sm:$0xff] %v91
    %98 = vst [vmem:[#allocation2 + $0x8] sm:$0xff] %v93
    %vm99 = vcmask 7168
    %100 = vst.msk [vmem:[#allocation3] sm:$0xff] %vm99, -inf
    %101 = vst.msk [vmem:[#allocation3 + $0x8] sm:$0xff] %vm99, -inf
    %102 = vst.msk [vmem:[#allocation4] sm:$0xff] %vm99, 0.0
    %103 = vst.msk [vmem:[#allocation4 + $0x8] sm:$0xff] %vm99, 0.0
    %104 = vst.msk [vmem:[#allocation5] sm:$0xff] %vm52, 0.0
    %105 = vst.msk [vmem:[#allocation5 + $0x8] sm:$0xff] %vm52, 0.0
  $region25: #{gcn_transformer_forward.1} parent=0 // pred_fallthru
    _
  %v106 = vld [vmem:[%s1] sm:$0xf]
  %v107 = vld [vmem:[%s3] sm:$0xf]
  %v108 = vld [vmem:[%s3 + $0x4] sm:$0xf]
  %v109 = vld [vmem:[%s3 + $0x8] sm:$0xf]
  %v110 = vld [vmem:[%s3 + $0xc] sm:$0xf]
  %v115 = vunpack.c.l.b16 %v107
  %v116 = vunpack.c.l.b16 %v108
  %v117 = vunpack.c.l.b16 %v109
  %v118 = vunpack.c.l.b16 %v110
  %v119 = vpack.c.b16 %v116, %v115
  %v120 = vpack.c.b16 %v118, %v117
  %vm123 = vcmask 261120
  %v125 = vsel %vm123, %v106, 0
  %127 = vmatprep.subr.bf16.mxu0 0
  %128 = vmatpush1.bf16.msra.mxu0 0
  %129 = vmatprep.subr.bf16.mxu0 0
  %130 = vmatpush1.bf16.msra.mxu0 0
  %131 = vmatprep.subr.bf16.mxu0 0
  %132 = vmatpush1.bf16.msra.mxu0 0
  %133 = vmatprep.subr.bf16.mxu0 0
  %134 = vmatpush1.bf16.msra.mxu0 0
  %135 = vmatprep.subr.bf16.mxu0 0
  %136 = vmatpush1.bf16.msra.mxu0 0
  %137 = vmatprep.subr.bf16.mxu0 0
  %138 = vmatpush1.bf16.msra.mxu0 0
  %139 = vmatprep.subr.bf16.mxu0 0
  %140 = vmatpush1.bf16.msra.mxu0 %v120
  %141 = vmatprep.subr.bf16.mxu0 0
  %142 = vmatpush1.bf16.msra.mxu0 %v119
  %143 = vmatprep.subr.bf16.mxu0 0
  %144 = vmatpush2.bf16.msra.mxu0 0
  %145 = vmatprep.subr.bf16.mxu0 0
  %146 = vmatpush2.bf16.msra.mxu0 0
  %147 = vmatprep.subr.bf16.mxu0 0
  %148 = vmatpush2.bf16.msra.mxu0 0
  %149 = vmatprep.subr.bf16.mxu0 0
  %150 = vmatpush2.bf16.msra.mxu0 0
  %151 = vmatprep.subr.bf16.mxu0 0
  %152 = vmatpush2.bf16.msra.mxu0 0
  %153 = vmatprep.subr.bf16.mxu0 0
  %154 = vmatpush2.bf16.msra.mxu0 0
  %155 = vmatprep.subr.bf16.mxu0 0
  %156 = vmatpush2.bf16.msra.mxu0 0
  %157 = vmatprep.subr.bf16.mxu0 0
  %158 = vmatpush2.bf16.msra.mxu0 0
  %159 = vmatprep.mubr.bf16.mxu0 0
  %160 = vmatmul.mubr.bf16.gmra.mxu0 %v125
  %v161 = vpop.f32.mrf.mxu0
  %v162 = vadd.f32 0.0, %v161
  %v163 = vpop.f32.mrf.mxu0
  %v164 = vpop.f32.mrf.mxu0
  %v165 = vpop.f32.mrf.mxu0
  %166 = vdwg.mxu0
  %v167 = vld [vmem:[%s4] sm:$0x3]
  %v168 = vunpack.c.0.s8 %v167
  %v169 = vcvt.s32.f32 %v168
  %v170 = vsub.f32 %v169, 1.0
  %v171 = vmul.f32 %v170, 1e+30
  %v172 = vld [vmem:[#allocation2] sm:$0xff]
  %v173 = vpack.c.bf16 %v172, %v172
  %v174 = vpack.c.bf16 %v162, %v162
  %v176 = vsel %vm123, %v173, 0
  %v179 = vsel %vm123, %v174, 0
  %181 = vmatprep.subr.bf16.mxu0 0
  %182 = vmatpush1.bf16.xpose.msra.mxu0 0
  %183 = vmatprep.subr.bf16.mxu0 0
  %184 = vmatpush1.bf16.xpose.msra.mxu0 0
  %185 = vmatprep.subr.bf16.mxu0 0
  %186 = vmatpush1.bf16.xpose.msra.mxu0 0
  %187 = vmatprep.subr.bf16.mxu0 0
  %188 = vmatpush1.bf16.xpose.msra.mxu0 0
  %189 = vmatprep.subr.bf16.mxu0 0
  %190 = vmatpush1.bf16.xpose.msra.mxu0 0
  %191 = vmatprep.subr.bf16.mxu0 0
  %192 = vmatpush1.bf16.xpose.msra.mxu0 0
  %193 = vmatprep.subr.bf16.mxu0 0
  %194 = vmatpush1.bf16.xpose.msra.mxu0 0
  %195 = vmatprep.subr.bf16.mxu0 0
  %196 = vmatpush1.bf16.xpose.msra.mxu0 %v179
  %197 = vmatprep.subr.bf16.mxu0 0
  %198 = vmatpush2.bf16.xpose.msra.mxu0 0
  %199 = vmatprep.subr.bf16.mxu0 0
  %200 = vmatpush2.bf16.xpose.msra.mxu0 0
  %201 = vmatprep.subr.bf16.mxu0 0
  %202 = vmatpush2.bf16.xpose.msra.mxu0 0
  %203 = vmatprep.subr.bf16.mxu0 0
  %204 = vmatpush2.bf16.xpose.msra.mxu0 0
  %205 = vmatprep.subr.bf16.mxu0 0
  %206 = vmatpush2.bf16.xpose.msra.mxu0 0
  %207 = vmatprep.subr.bf16.mxu0 0
  %208 = vmatpush2.bf16.xpose.msra.mxu0 0
  %209 = vmatprep.subr.bf16.mxu0 0
  %210 = vmatpush2.bf16.xpose.msra.mxu0 0
  %211 = vmatprep.subr.bf16.mxu0 0
  %212 = vmatpush2.bf16.xpose.msra.mxu0 0
  %213 = vmatprep.mubr.bf16.mxu0 0
  %214 = vmatmul.mubr.bf16.gmra.mxu0 %v176
  %v215 = vpop.f32.mrf.mxu0
  %v216 = vadd.f32 0.0, %v215
  %v217 = vpop.f32.mrf.mxu0
  %v218 = vpop.f32.mrf.mxu0
  %v219 = vpop.f32.mrf.mxu0
  %220 = vdwg.mxu0
  %v221 = vmul.f32 %v216, 0.17677669
  %v222 = vadd.f32 %v221, %v171
  %v223 = vld [vmem:[#allocation3] sm:$0xff]
  %vm224 = vcmask 64512
  %v225 = vsel %vm224, %v222, -inf
  %226 = vmax.xlane.f32.xlu0 %v225
  %v227 = vpop.xlane.xlu0 %226
  %v228 = vmax.f32 %v223, %v227
  %230 = vset.pattern.permute.xlu0 0
  %231 = vperm.xlu0 %230, %v228
  %v232 = vpop.permute.xlu0 %231
  %v234 = vsub.f32 %v222, %v232
  %v235 = vmul.f32 %v234, 1.442695
  %v236 = vpow.pop %v235
  %v237 = vmul.f32 %v236, %v169
  %v238 = vsub.f32 %v223, %v228
  %v239 = vmul.f32 %v238, 1.442695
  %v240 = vpow.pop %v239
  %v241 = vld [vmem:[#allocation4] sm:$0xff]
  %v242 = vmul.f32 %v240, %v241
  %v243 = vsel %vm224, %v237, 0.0
  %244 = vadd.xlane.f32.xlu0 %v243
  %v245 = vpop.xlane.xlu0 %244
  %v246 = vadd.f32 %v242, %v245
  %vm247 = vcmask 7168
  %248 = vst.msk [vmem:[#allocation4] sm:$0xff] %vm247, %v246
  %v249 = vld [vmem:[#allocation5] sm:$0xff]
  %251 = vset.pattern.permute.xlu0 0
  %252 = vperm.xlu0 %251, %v240
  %v253 = vpop.permute.xlu0 %252
  %v255 = vmul.f32 %v253, %v249
  %v256 = vpack.c.bf16 %v237, %v237
  %258 = vrot.lane.b32.xlu0 %v174, 64
  %v259 = vpop.permute.xlu0 %258
  %v261 = vsel %vm224, %v256, 0
  %vm263 = vcmask 1043456
  %v265 = vsel %vm263, %v259, 0
  %267 = vmatprep.subr.bf16.mxu0 0
  %268 = vmatpush1.bf16.msra.mxu0 0
  %269 = vmatprep.subr.bf16.mxu0 0
  %270 = vmatpush1.bf16.msra.mxu0 0
  %271 = vmatprep.subr.bf16.mxu0 0
  %272 = vmatpush1.bf16.msra.mxu0 0
  %273 = vmatprep.subr.bf16.mxu0 0
  %274 = vmatpush1.bf16.msra.mxu0 0
  %275 = vmatprep.subr.bf16.mxu0 0
  %276 = vmatpush1.bf16.msra.mxu0 0
  %277 = vmatprep.subr.bf16.mxu0 0
  %278 = vmatpush1.bf16.msra.mxu0 0
  %279 = vmatprep.subr.bf16.mxu0 0
  %280 = vmatpush1.bf16.msra.mxu0 0
  %281 = vmatprep.subr.bf16.mxu0 0
  %282 = vmatpush1.bf16.msra.mxu0 %v265
  %283 = vmatprep.subr.bf16.mxu0 0
  %284 = vmatpush2.bf16.msra.mxu0 0
  %285 = vmatprep.subr.bf16.mxu0 0
  %286 = vmatpush2.bf16.msra.mxu0 0
  %287 = vmatprep.subr.bf16.mxu0 0
  %288 = vmatpush2.bf16.msra.mxu0 0
  %289 = vmatprep.subr.bf16.mxu0 0
  %290 = vmatpush2.bf16.msra.mxu0 0
  %291 = vmatprep.subr.bf16.mxu0 0
  %292 = vmatpush2.bf16.msra.mxu0 0
  %293 = vmatprep.subr.bf16.mxu0 0
  %294 = vmatpush2.bf16.msra.mxu0 0
  %295 = vmatprep.subr.bf16.mxu0 0
  %296 = vmatpush2.bf16.msra.mxu0 0
  %297 = vmatprep.subr.bf16.mxu0 0
  %298 = vmatpush2.bf16.msra.mxu0 0
  %299 = vmatprep.mubr.bf16.mxu0 0
  %300 = vmatmul.mubr.bf16.gmra.mxu0 %v261
  %v301 = vpop.f32.mrf.mxu0
  %v302 = vadd.f32 0.0, %v301
  %v303 = vpop.f32.mrf.mxu0
  %v304 = vpop.f32.mrf.mxu0
  %v305 = vpop.f32.mrf.mxu0
  %306 = vdwg.mxu0
  %v307 = vadd.f32 %v255, %v302
  %308 = vst.msk [vmem:[#allocation5] sm:$0xff] %vm123, %v307
  %309 = vst.msk [vmem:[#allocation3] sm:$0xff] %vm247, %v228
  %v310 = vld [vmem:[#allocation2] sm:$0xff]
  %v311 = vpack.c.bf16 %v310, %v310
  %313 = vrot.lane.b32.xlu0 %v311, 96
  %v314 = vpop.permute.xlu0 %313
  %315 = vrot.lane.b32.xlu0 %v174, 96
  %v316 = vpop.permute.xlu0 %315
  %v318 = vsel %vm123, %v314, 0
  %v321 = vsel %vm123, %v316, 0
  %323 = vmatprep.subr.bf16.mxu0 0
  %324 = vmatpush1.bf16.xpose.msra.mxu0 0
  %325 = vmatprep.subr.bf16.mxu0 0
  %326 = vmatpush1.bf16.xpose.msra.mxu0 0
  %327 = vmatprep.subr.bf16.mxu0 0
  %328 = vmatpush1.bf16.xpose.msra.mxu0 0
  %329 = vmatprep.subr.bf16.mxu0 0
  %330 = vmatpush1.bf16.xpose.msra.mxu0 0
  %331 = vmatprep.subr.bf16.mxu0 0
  %332 = vmatpush1.bf16.xpose.msra.mxu0 0
  %333 = vmatprep.subr.bf16.mxu0 0
  %334 = vmatpush1.bf16.xpose.msra.mxu0 0
  %335 = vmatprep.subr.bf16.mxu0 0
  %336 = vmatpush1.bf16.xpose.msra.mxu0 0
  %337 = vmatprep.subr.bf16.mxu0 0
  %338 = vmatpush1.bf16.xpose.msra.mxu0 %v321
  %339 = vmatprep.subr.bf16.mxu0 0
  %340 = vmatpush2.bf16.xpose.msra.mxu0 0
  %341 = vmatprep.subr.bf16.mxu0 0
  %342 = vmatpush2.bf16.xpose.msra.mxu0 0
  %343 = vmatprep.subr.bf16.mxu0 0
  %344 = vmatpush2.bf16.xpose.msra.mxu0 0
  %345 = vmatprep.subr.bf16.mxu0 0
  %346 = vmatpush2.bf16.xpose.msra.mxu0 0
  %347 = vmatprep.subr.bf16.mxu0 0
  %348 = vmatpush2.bf16.xpose.msra.mxu0 0
  %349 = vmatprep.subr.bf16.mxu0 0
  %350 = vmatpush2.bf16.xpose.msra.mxu0 0
  %351 = vmatprep.subr.bf16.mxu0 0
  %352 = vmatpush2.bf16.xpose.msra.mxu0 0
  %353 = vmatprep.subr.bf16.mxu0 0
  %354 = vmatpush2.bf16.xpose.msra.mxu0 0
  %355 = vmatprep.mubr.bf16.mxu0 0
  %356 = vmatmul.mubr.bf16.gmra.mxu0 %v318
  %v357 = vpop.f32.mrf.mxu0
  %v358 = vadd.f32 0.0, %v357
  %v359 = vpop.f32.mrf.mxu0
  %v360 = vpop.f32.mrf.mxu0
  %v361 = vpop.f32.mrf.mxu0
  %362 = vdwg.mxu0
  %v363 = vmul.f32 %v358, 0.17677669
  %v364 = vadd.f32 %v363, %v171
  %s365 = scalar_lea.vmem [#allocation3], 8
  %v366 = vld [vmem:[%s365] sm:$0xff]
  %v367 = vsel %vm224, %v364, -inf
  %368 = vmax.xlane.f32.xlu0 %v367
  %v369 = vpop.xlane.xlu0 %368
  %v370 = vmax.f32 %v366, %v369
  %372 = vset.pattern.permute.xlu0 0
  %373 = vperm.xlu0 %372, %v370
  %v374 = vpop.permute.xlu0 %373
  %v376 = vsub.f32 %v364, %v374
  %v377 = vmul.f32 %v376, 1.442695
  %v378 = vpow.pop %v377
  %v379 = vmul.f32 %v378, %v169
  %v380 = vsub.f32 %v366, %v370
  %v381 = vmul.f32 %v380, 1.442695
  %v382 = vpow.pop %v381
  %s383 = scalar_lea.vmem [#allocation4], 8
  %v384 = vld [vmem:[%s383] sm:$0xff]
  %v385 = vmul.f32 %v382, %v384
  %v386 = vsel %vm224, %v379, 0.0
  %387 = vadd.xlane.f32.xlu0 %v386
  %v388 = vpop.xlane.xlu0 %387
  %v389 = vadd.f32 %v385, %v388
  %390 = vst.msk [vmem:[%s383] sm:$0xff] %vm247, %v389
  %s391 = scalar_lea.vmem [#allocation5], 8
  %v392 = vld [vmem:[%s391] sm:$0xff]
  %394 = vset.pattern.permute.xlu0 0
  %395 = vperm.xlu0 %394, %v382
  %v396 = vpop.permute.xlu0 %395
  %v398 = vmul.f32 %v396, %v392
  %v399 = vpack.c.bf16 %v379, %v379
  %400 = vrot.lane.b32.xlu0 %v174, 32
  %v401 = vpop.permute.xlu0 %400
  %v403 = vsel %vm224, %v399, 0
  %v406 = vsel %vm263, %v401, 0
  %408 = vmatprep.subr.bf16.mxu0 0
  %409 = vmatpush1.bf16.msra.mxu0 0
  %410 = vmatprep.subr.bf16.mxu0 0
  %411 = vmatpush1.bf16.msra.mxu0 0
  %412 = vmatprep.subr.bf16.mxu0 0
  %413 = vmatpush1.bf16.msra.mxu0 0
  %414 = vmatprep.subr.bf16.mxu0 0
  %415 = vmatpush1.bf16.msra.mxu0 0
  %416 = vmatprep.subr.bf16.mxu0 0
  %417 = vmatpush1.bf16.msra.mxu0 0
  %418 = vmatprep.subr.bf16.mxu0 0
  %419 = vmatpush1.bf16.msra.mxu0 0
  %420 = vmatprep.subr.bf16.mxu0 0
  %421 = vmatpush1.bf16.msra.mxu0 0
  %422 = vmatprep.subr.bf16.mxu0 0
  %423 = vmatpush1.bf16.msra.mxu0 %v406
  %424 = vmatprep.subr.bf16.mxu0 0
  %425 = vmatpush2.bf16.msra.mxu0 0
  %426 = vmatprep.subr.bf16.mxu0 0
  %427 = vmatpush2.bf16.msra.mxu0 0
  %428 = vmatprep.subr.bf16.mxu0 0
  %429 = vmatpush2.bf16.msra.mxu0 0
  %430 = vmatprep.subr.bf16.mxu0 0
  %431 = vmatpush2.bf16.msra.mxu0 0
  %432 = vmatprep.subr.bf16.mxu0 0
  %433 = vmatpush2.bf16.msra.mxu0 0
  %434 = vmatprep.subr.bf16.mxu0 0
  %435 = vmatpush2.bf16.msra.mxu0 0
  %436 = vmatprep.subr.bf16.mxu0 0
  %437 = vmatpush2.bf16.msra.mxu0 0
  %438 = vmatprep.subr.bf16.mxu0 0
  %439 = vmatpush2.bf16.msra.mxu0 0
  %440 = vmatprep.mubr.bf16.mxu0 0
  %441 = vmatmul.mubr.bf16.gmra.mxu0 %v403
  %v442 = vpop.f32.mrf.mxu0
  %v443 = vadd.f32 0.0, %v442
  %v444 = vpop.f32.mrf.mxu0
  %v445 = vpop.f32.mrf.mxu0
  %v446 = vpop.f32.mrf.mxu0
  %447 = vdwg.mxu0
  %v448 = vadd.f32 %v398, %v443
  %449 = vst.msk [vmem:[%s391] sm:$0xff] %vm123, %v448
  %450 = vst.msk [vmem:[%s365] sm:$0xff] %vm247, %v370
  // Predicated region
  $region26: #{gcn_transformer_forward.1} parent=0 // pred_check
    %p451 = pneg %p23
  $region27: #{gcn_transformer_forward.1} parent=0 // pred_check_branch
    %453 = sbr.rel (%p451) target = $region29
  $region28: #{gcn_transformer_forward.1} parent=0 // pred_region
    %v454 = vld [vmem:[#allocation2] sm:$0xff]
    %v455 = vld [vmem:[#allocation4] sm:$0xff]
    %vm456 = vcmp.gt.f32.partialorder %v455, 0.0
    %v457 = vsel %vm456, %v455, 1.0
    %v458 = vld [vmem:[#allocation5] sm:$0xff]
    %v459 = vrcp.pop %v457
    %461 = vset.pattern.permute.xlu0 0
    %462 = vperm.xlu0 %461, %v459
    %v463 = vpop.permute.xlu0 %462
    %v465 = vmul.f32 %v458, %v463
    %467 = vrot.lane.b32.xlu0 %v465, 64
    %v468 = vpop.permute.xlu0 %467
    %v470 = vadd.f32 %v454, %v468
    %v471 = vld [vmem:[#allocation3] sm:$0xff]
    %v472 = vlog2.pop %v457
    %v473 = vmul.f32 %v472, 0.6931472
    %v474 = vadd.f32 %v471, %v473
    %v475 = vld [vmem:[%s383] sm:$0xff]
    %vm476 = vcmp.gt.f32.partialorder %v475, 0.0
    %v477 = vsel %vm476, %v475, 1.0
    %v478 = vld [vmem:[%s391] sm:$0xff]
    %v479 = vrcp.pop %v477
    %481 = vset.pattern.permute.xlu0 0
    %482 = vperm.xlu0 %481, %v479
    %v483 = vpop.permute.xlu0 %482
    %v485 = vmul.f32 %v478, %v483
    %487 = vrot.lane.b32.xlu0 %v485, 64
    %v488 = vpop.permute.xlu0 %487
    %v490 = vadd.f32 %v470, %v488
    %v491 = vld [vmem:[%s365] sm:$0xff]
    %v492 = vlog2.pop %v477
    %v493 = vmul.f32 %v492, 0.6931472
    %v494 = vadd.f32 %v491, %v493
    %vm495 = vcmp.ge.f32.partialorder %v490, 0.0
    %v496 = vmul.f32 %v490, 0.01
    %v497 = vsel %vm495, %v490, %v496
    %499 = vrot.lane.b32.xlu0 %v497, 64
    %v500 = vpop.permute.xlu0 %499
    %503 = vrot.lane.b32.xlu0 %v474, 32
    %v504 = vpop.permute.xlu0 %503
    %507 = vrot.lane.b32.xlu0 %v494, 33
    %v508 = vpop.permute.xlu0 %507
    %v510 = vsel %vm123, %v500, %v504
    %vm511 = vcmask 269312
    %v512 = vsel %vm511, %v510, %v508
    %vm513 = vcmask 277504
    %v514 = vsel %vm513, %v512, 0.0
    %515 = vst [vmem:[%s5] sm:$0xff] %v514
    %v516 = vld [vmem:[#allocation2] sm:$0xff]
    %v517 = vld [vmem:[#allocation2] sm:$0xff]
    %v518 = vld [vmem:[#allocation2 + $0x8] sm:$0xff]
    %521 = vrot.lane.b32.xlu0 %v517, 96
    %v522 = vpop.permute.xlu0 %521
    %523 = vrot.lane.b32.xlu0 %v518, 96
    %v524 = vpop.permute.xlu0 %523
    %vm525 = vcmask 785408
    %v526 = vsel %vm525, %v522, %v524
    %vm528 = vcmask 523264
    %v529 = vsel %vm528, %v516, %v526
    %530 = vst [vmem:[%s6] sm:$0xff] %v529
  $region29: #{gcn_transformer_forward.1} parent=0 // pred_fallthru
    _
  // Predicated region
  $region30: #{gcn_transformer_forward.1} parent=0 // pred_check
    _
  $region31: #{gcn_transformer_forward.1} parent=0 // pred_check_branch
    %532 = sbr.rel (0) target = $region33
  $region32: #{gcn_transformer_forward.1} parent=0 // pred_region
    _
  $region33: #{gcn_transformer_forward.1} parent=0 // pred_fallthru
    _
  // Predicated region
  $region34: #{gcn_transformer_forward.1} parent=0 // pred_check
    _
  $region35: #{gcn_transformer_forward.1} parent=0 // pred_check_branch
    %534 = sbr.rel (0) target = $region37
  $region36: #{gcn_transformer_forward.1} parent=0 // pred_region
    _
  $region37: #{gcn_transformer_forward.1} parent=0 // pred_fallthru
    _
  // Predicated region
  $region38: #{gcn_transformer_forward.1} parent=0 // pred_check
    _
  $region39: #{gcn_transformer_forward.1} parent=0 // pred_check_branch
    %536 = sbr.rel (0) target = $region41
  $region40: #{gcn_transformer_forward.1} parent=0 // pred_region
    _
  $region41: #{gcn_transformer_forward.1} parent=0 // pred_fallthru
    _
  // Predicated region
  $region42: #{gcn_transformer_forward.1} parent=0 // pred_check
    _
  $region43: #{gcn_transformer_forward.1} parent=0 // pred_check_branch
    %538 = sbr.rel (0) target = $region45
  $region44: #{gcn_transformer_forward.1} parent=0 // pred_region
    _
  $region45: #{gcn_transformer_forward.1} parent=0 // pred_fallthru
    _

</llo_original>
